<compile_context>
chip_gen: v5e
topology: v5e:2x2
jax: 0.10.0
libtpu: 0.0.40
codegen_flags: <defaults>
</compile_context>

<pallas_src>
import math

import jax
import jax.numpy as jnp
from jax.experimental import pallas as pl
from jax.experimental.pallas import tpu as pltpu


# ----------------------------------------------------------------------------
# Positional-encoding table (identical to SpatialPositionalEncoding.__init__)
# ----------------------------------------------------------------------------
def make_pe(max_h: int, max_w: int, d_model: int) -> jnp.ndarray:
    """even channels (0::2): sin(h*div) + sin(w*div); odd: cos(h*div) + cos(w*div)."""
    assert d_model % 2 == 0
    d2 = d_model // 2
    h_pos = jnp.arange(max_h, dtype=jnp.float32)[:, None, None]          # (H,1,1)
    w_pos = jnp.arange(max_w, dtype=jnp.float32)[None, :, None]          # (1,W,1)
    div_term = jnp.exp(
        jnp.arange(0, d_model, 2, dtype=jnp.float32) * (-math.log(10000.0) / d_model)
    )                                                                     # (d2,)
    even = jnp.broadcast_to(jnp.sin(h_pos * div_term), (max_h, max_w, d2)) + \
           jnp.broadcast_to(jnp.sin(w_pos * div_term), (max_h, max_w, d2))
    odd = jnp.broadcast_to(jnp.cos(h_pos * div_term), (max_h, max_w, d2)) + \
          jnp.broadcast_to(jnp.cos(w_pos * div_term), (max_h, max_w, d2))
    pe = jnp.stack([even, odd], axis=-1).reshape(max_h, max_w, d_model)   # interleave
    return pe[None]                                                       # (1,H,W,D)


def prepare_pe(pe: jnp.ndarray, H: int, W: int, dtype) -> jnp.ndarray:
    """One-time per model: slice to (H,W), cast to the activation dtype, and
    reshape lane-dense to (1, H, W*D). Cache the result; do NOT redo per call."""
    _, max_h, max_w, D = pe.shape
    assert H <= max_h and W <= max_w
    pe = pe[:, :H, :W, :].astype(dtype)
    return pe.reshape(1, H, W * D)


# ----------------------------------------------------------------------------
# Kernel: pure VPU elementwise add on lane-dense tiles
# ----------------------------------------------------------------------------
def _add_pe_kernel(x_ref, pe_ref, o_ref):
    # x_ref/o_ref: (bt, tm, W*D); pe_ref: (1, tm, W*D) -> broadcast over batch.
    o_ref[...] = x_ref[...] + pe_ref[...]


# ----------------------------------------------------------------------------
# Tiling helpers
# ----------------------------------------------------------------------------
def _round_up(x: int, m: int) -> int:
    return ((x + m - 1) // m) * m


def _vmem_capacity_bytes() -> int:
    try:
        cap = int(getattr(pltpu.get_tpu_info(), "vmem_capacity_bytes", 0))
        if cap > 0:
            return cap
    except Exception:
        pass
    return 32 * 1024 * 1024   # conservative fallback


def _choose_rows(H: int, align: int, max_rows: int):
    """Pick a sublane-aligned row tile; return (tm, H_pad)."""
    max_rows = max(align, (max_rows // align) * align)
    H_al = _round_up(H, align)
    if H_al <= max_rows:
        return H_al, H_al                      # single tile along H (maybe padded)
    # Largest multiple-of-align divisor of H within budget (no padding needed).
    best = 0
    for cand in range(align, max_rows + 1, align):
        if H % cand == 0:
            best = cand
    if best >= max(align, max_rows // 2):
        return best, H
    # Awkward H: take a full-budget tile and pad H up to a multiple of it.
    return max_rows, _round_up(H, max_rows)


# ----------------------------------------------------------------------------
# Wrapper
# ----------------------------------------------------------------------------
def spatial_positional_encoding(
    x: jnp.ndarray,
    pe3: jnp.ndarray,
    *,
    donate: bool = False,
    tile_budget_bytes: int | None = None,
) -> jnp.ndarray:
    """x: (B, H, W, D); pe3: kernel-ready (1, H, W*D) in x.dtype (see prepare_pe).

    Returns x + pe (dropout is identity in eval mode).
    Set donate=True ONLY if the caller gives up x (enables in-place add);
    otherwise the alias would force a defensive copy of the activations.
    """
    B, H, W, D = x.shape
    WD = W * D
    assert pe3.shape == (1, H, WD), (pe3.shape, (1, H, WD))
    assert pe3.dtype == x.dtype

    itemsize = jnp.dtype(x.dtype).itemsize
    align = max(8, 32 // itemsize)            # sublane pack: f32 8, bf16 16, int8 32
    row_bytes = WD * itemsize

    vmem_cap = _vmem_capacity_bytes()
    if tile_budget_bytes is None:
        # x + pe + out, each double-buffered -> ~6x one tile; keep one tile at
        # ~cap/12 so the pipelined footprint stays near ~cap/2.
        budget = max(1 << 20, vmem_cap // 12)
    else:
        budget = int(tile_budget_bytes)

    # Fold the batch into the block whenever even the smallest aligned
    # batch-collapsed tile fits the budget (B x fewer grid steps, larger DMAs).
    collapse_batch = B * align * row_bytes <= budget
    if collapse_batch:
        tm, H_pad = _choose_rows(H, align, max(align, budget // (B * row_bytes)))
    else:
        tm, H_pad = _choose_rows(H, align, max(align, budget // row_bytes))

    x3 = x.reshape(B, H, WD)                  # lane-dense last axis (multiple of 128)
    if H_pad != H:
        # Awkward H: pad rows with zeros at the JAX level and slice back after.
        x3 = jnp.pad(x3, ((0, 0), (0, H_pad - H), (0, 0)))
        pe3 = jnp.pad(pe3, ((0, 0), (0, H_pad - H), (0, 0)))

    n_h = H_pad // tm

    if collapse_batch:
        grid = (n_h,)
        x_spec = pl.BlockSpec((B, tm, WD), lambda h: (0, h, 0))
        pe_spec = pl.BlockSpec((1, tm, WD), lambda h: (0, h, 0))
        out_spec = pl.BlockSpec((B, tm, WD), lambda h: (0, h, 0))
        dim_sem = ("parallel",)
        x_tile = B * tm * row_bytes
        pe_tile = tm * row_bytes
    else:
        # Batch innermost: PE block index is b-invariant -> PE tile stays
        # resident in VMEM across the batch loop (no re-DMA of PE).
        grid = (n_h, B)
        x_spec = pl.BlockSpec((1, tm, WD), lambda h, b: (b, h, 0))
        pe_spec = pl.BlockSpec((1, tm, WD), lambda h, b: (0, h, 0))
        out_spec = pl.BlockSpec((1, tm, WD), lambda h, b: (b, h, 0))
        # v7x megacore must shard the H axis, never the inner batch axis.
        dim_sem = ("parallel", "arbitrary")
        x_tile = tm * row_bytes
        pe_tile = tm * row_bytes

    # Double-buffered x / pe / out tiles plus headroom, capped well below the
    # chip's physical VMEM (48 MiB on v7x, 112 MiB on v5e/v6e).
    footprint = 2 * (2 * x_tile + pe_tile)
    headroom_cap = max(8 << 20, vmem_cap - (16 << 20))
    vmem_limit = int(min(headroom_cap, max(4 << 20, footprint + (2 << 20))))
    assert footprint <= vmem_limit, (footprint, vmem_limit)
    # TODO(synk): for extremely wide rows (W*D tile alone exceeding the budget)
    #             the lane axis would also need tiling; not required here.

    out3 = pl.pallas_call(
        _add_pe_kernel,
        out_shape=jax.ShapeDtypeStruct((B, H_pad, WD), x.dtype),
        grid_spec=pltpu.PrefetchScalarGridSpec(
            num_scalar_prefetch=0,
            grid=grid,
            in_specs=[x_spec, pe_spec],
            out_specs=out_spec,
        ),
        compiler_params=pltpu.CompilerParams(
            dimension_semantics=dim_sem,
            vmem_limit_bytes=vmem_limit,
        ),
        input_output_aliases=({0: 0} if donate else {}),
    )(x3, pe3)

    if H_pad != H:
        out3 = out3[:, :H, :]
    return out3.reshape(B, H, W, D)


# ----------------------------------------------------------------------------
# Self-test
# ----------------------------------------------------------------------------
if __name__ == "__main__":
    # Small shapes consistent with the module: batch=2, H=W=16 spatial, d_model=32.
    B, H, W, D = 2, 16, 16, 32
    key = jax.random.PRNGKey(0)
    x = jax.random.normal(key, (B, H, W, D), dtype=jnp.float32)

    pe = make_pe(H, W, D)                        # (1, H, W, D) buffer (as in __init__)
    pe3 = prepare_pe(pe, H, W, jnp.float32)      # cached once per model in practice

    ref = x + pe[:, :H, :W, :]

    # 1) default path: batch folded into the block, single grid step
    out = jax.block_until_ready(spatial_positional_encoding(x, pe3))
    assert out.shape == (B, H, W, D)
    assert jnp.allclose(out, ref, atol=1e-6, rtol=1e-6)

    # 2) force the 2-D (H-tiles, batch) grid with a tiny tile budget
    out2 = jax.block_until_ready(
        spatial_positional_encoding(x, pe3, tile_budget_bytes=8 * W * D * 4)
    )
    assert jnp.allclose(out2, ref, atol=1e-6, rtol=1e-6)

    # 3) bf16 activations (rows aligned to the 16-sublane packed tile)
    xb = x.astype(jnp.bfloat16)
    pe3b = prepare_pe(pe, H, W, jnp.bfloat16)
    refb = xb + pe[:, :H, :W, :].astype(jnp.bfloat16)
    outb = jax.block_until_ready(spatial_positional_encoding(xb, pe3b))
    assert outb.dtype == jnp.bfloat16
    assert jnp.allclose(outb.astype(jnp.float32), refb.astype(jnp.float32),
                        atol=1e-2, rtol=1e-2)

    # 4) awkward H (not a multiple of 8): padded-rows path
    H2 = 12
    x2 = jax.random.normal(jax.random.PRNGKey(1), (B, H2, W, D), dtype=jnp.float32)
    pe3_h2 = prepare_pe(pe, H2, W, jnp.float32)
    ref2 = x2 + pe[:, :H2, :W, :]
    out4 = jax.block_until_ready(spatial_positional_encoding(x2, pe3_h2))
    assert out4.shape == (B, H2, W, D)
    assert jnp.allclose(out4, ref2, atol=1e-6, rtol=1e-6)

    # 5) donate=True (in-place alias when the caller gives up x)
    out5 = jax.block_until_ready(spatial_positional_encoding(x, pe3, donate=True))
    assert jnp.allclose(out5, ref, atol=1e-6, rtol=1e-6)

    print("KERNEL_OK")
</pallas_src>

<mosaic_0001>
module attributes {stable_mosaic.version = 11 : i64} {
  func.func @_add_pe_kernel(%arg0: i32, %arg1: memref<2x16x512xf32, #tpu.memory_space<vmem>>, %arg2: memref<1x16x512xf32, #tpu.memory_space<vmem>>, %arg3: memref<2x16x512xf32, #tpu.memory_space<vmem>>) attributes {dimension_semantics = [#tpu.dimension_semantics<parallel>], iteration_bounds = array<i64: 1>, scalar_prefetch = 0 : i64, scratch_operands = 0 : i64, tpu.core_type = #tpu.core_type<tc>, window_params = [{transform_indices = @transform_0, window_bounds = array<i64: 2, 16, 512>}, {transform_indices = @transform_1, window_bounds = array<i64: 1, 16, 512>}, {transform_indices = @transform_2, window_bounds = array<i64: 2, 16, 512>}]} {
    %c0 = arith.constant 0 : index
    %c0_0 = arith.constant 0 : index
    %c0_1 = arith.constant 0 : index
    %0 = vector.load %arg1[%c0, %c0_0, %c0_1] : memref<2x16x512xf32, #tpu.memory_space<vmem>>, vector<2x16x512xf32>
    %c0_2 = arith.constant 0 : index
    %c0_3 = arith.constant 0 : index
    %c0_4 = arith.constant 0 : index
    %1 = vector.load %arg2[%c0_2, %c0_3, %c0_4] : memref<1x16x512xf32, #tpu.memory_space<vmem>>, vector<1x16x512xf32>
    %2 = vector.broadcast %1 : vector<1x16x512xf32> to vector<2x16x512xf32>
    %3 = arith.addf %0, %2 : vector<2x16x512xf32>
    %c0_5 = arith.constant 0 : index
    %c0_6 = arith.constant 0 : index
    %c0_7 = arith.constant 0 : index
    %4 = vector.load %arg3[%c0_5, %c0_6, %c0_7] : memref<2x16x512xf32, #tpu.memory_space<vmem>>, vector<2x16x512xf32>
    tpu.vector_store %arg3[%c0_5, %c0_6, %c0_7], %3 {strides = array<i32>} : memref<2x16x512xf32, #tpu.memory_space<vmem>>, vector<2x16x512xf32>,
    return
  }
  func.func @transform_0(%arg0: i32) -> (i32, i32, i32) {
    %c0_i32 = arith.constant 0 : i32
    %c0_i32_0 = arith.constant 0 : i32
    %c0_i32_1 = arith.constant 0 : i32
    return %c0_i32, %arg0, %c0_i32_0 : i32, i32, i32
  }
  func.func @transform_1(%arg0: i32) -> (i32, i32, i32) {
    %c0_i32 = arith.constant 0 : i32
    %c0_i32_0 = arith.constant 0 : i32
    %c0_i32_1 = arith.constant 0 : i32
    return %c0_i32, %arg0, %c0_i32_0 : i32, i32, i32
  }
  func.func @transform_2(%arg0: i32) -> (i32, i32, i32) {
    %c0_i32 = arith.constant 0 : i32
    %c0_i32_0 = arith.constant 0 : i32
    %c0_i32_1 = arith.constant 0 : i32
    return %c0_i32, %arg0, %c0_i32_0 : i32, i32, i32
  }
}

</mosaic_0001>

<llo_original>
// kernel: tpu_custom_call.1
$region0: #{tpu_custom_call.1}
  #allocation0 [shape = 'u32[]', space=smem, size = 0x4, offset = 0x4, fixed_abs, tag = 'smem constant byte address 0x4 - core index']
  #allocation1 [shape = 'u32[72,128]{1,0:T(1,128)}', space=vmem, size = 0x9000, scoped, tag = 'internal scratch']
  %s0 = inlined_call_operand.hbm [shape: f32[2,16,512], index: 0, kind: input, shape index: {}]
  %s1 = inlined_call_operand.hbm [shape: f32[1,16,512], index: 1, kind: input, shape index: {}]
  %s2 = inlined_call_operand.hbm [shape: f32[2,16,512], index: 2, kind: output, shape index: {}]
  %s3 = sld [smem:[#allocation0]]
  $region26: #{tpu_custom_call.1} parent=0
    _
  %s5 = ssub.s32 1, %s3
  %s6 = scalar_select 0, %s5, %s3
  $region1: #{tpu_custom_call.1} parent=0
    #allocation2 [shape = 'u8[65536]{0}', space=vmem, size = 0x10000, scoped, tag = 'input window, operand 0, single buffered']
    #allocation3 [shape = 's32[1]{0}', space=sflag, size = 0x4, scoped, tag = 'scoped memory for tpu_custom_call.1']
    #allocation4 [shape = 's32[1]{0}', space=sflag, size = 0x4, scoped, tag = 'scoped memory for tpu_custom_call.1']
    #allocation5 [shape = 'u8[32768]{0}', space=vmem, size = 0x8000, scoped, tag = 'input window, operand 1, single buffered']
    #allocation6 [shape = 's32[1]{0}', space=sflag, size = 0x4, scoped, tag = 'scoped memory for tpu_custom_call.1']
    #allocation7 [shape = 'u8[65536]{0}', space=vmem, size = 0x10000, scoped, tag = 'output window, operand 0, single buffered']
    %7 = vsyncpa [#allocation3], 0
    %8 = vsyncpa [#allocation6], 0
    %9 = vsyncpa [#allocation4], 0
    // Predicated region
    $region2: #{tpu_custom_call.1} parent=1 // pred_check
      _
    $region3: #{tpu_custom_call.1} parent=1 // pred_check_branch
      %11 = sbr.rel (0) target = $region5
    $region4: #{tpu_custom_call.1} parent=1 // pred_region
      %13 = vsyncadd [#allocation3], 0
      %s14 = sshll.u32 %s0, 4
      %s15 = int_to_ptr.hbm [resolvable:$true] %s14
      %s16 = sshll.u32 [#allocation2], 4
      %s17 = int_to_ptr.vmem [resolvable:$true] %s16
      %22 = dma.hbm_to_vmem [thread:$0]  %s15, 2048, %s17, [#allocation3], 512, 512, 32
    $region5: #{tpu_custom_call.1} parent=1 // pred_fallthru
      _
    // Predicated region
    $region6: #{tpu_custom_call.1} parent=1 // pred_check
      _
    $region7: #{tpu_custom_call.1} parent=1 // pred_check_branch
      %24 = sbr.rel (0) target = $region9
    $region8: #{tpu_custom_call.1} parent=1 // pred_region
      %26 = vsyncadd [#allocation6], 0
      %s27 = sshll.u32 %s1, 4
      %s28 = int_to_ptr.hbm [resolvable:$true] %s27
      %s29 = sshll.u32 [#allocation5], 4
      %s30 = int_to_ptr.vmem [resolvable:$true] %s29
      %35 = dma.hbm_to_vmem [thread:$0]  %s28, 1024, %s30, [#allocation6], 512, 512, 32
    $region9: #{tpu_custom_call.1} parent=1 // pred_fallthru
      _
    // Predicated region
    $region10: #{tpu_custom_call.1} parent=1 // pred_check
      _
    $region11: #{tpu_custom_call.1} parent=1 // pred_check_branch
      %37 = sbr.rel (0) target = $region13
    $region12: #{tpu_custom_call.1} parent=1 // pred_region
      %39 = dma.done [#allocation3], 2048
    $region13: #{tpu_custom_call.1} parent=1 // pred_fallthru
      _
    // Predicated region
    $region14: #{tpu_custom_call.1} parent=1 // pred_check
      _
    $region15: #{tpu_custom_call.1} parent=1 // pred_check_branch
      %41 = sbr.rel (0) target = $region17
    $region16: #{tpu_custom_call.1} parent=1 // pred_region
      %43 = dma.done [#allocation6], 1024
    $region17: #{tpu_custom_call.1} parent=1 // pred_fallthru
      _
    %v44 = vld [vmem:[#allocation2] sm:$0xff]
    %v45 = vld [vmem:[#allocation2 + $0x8] sm:$0xff]
    %v46 = vld [vmem:[#allocation2 + $0x10] sm:$0xff]
    %v47 = vld [vmem:[#allocation2 + $0x18] sm:$0xff]
    %v48 = vld [vmem:[#allocation2 + $0x20] sm:$0xff]
    %v49 = vld [vmem:[#allocation2 + $0x28] sm:$0xff]
    %v50 = vld [vmem:[#allocation2 + $0x30] sm:$0xff]
    %v51 = vld [vmem:[#allocation2 + $0x38] sm:$0xff]
    %v52 = vld [vmem:[#allocation2 + $0x40] sm:$0xff]
    %v53 = vld [vmem:[#allocation2 + $0x48] sm:$0xff]
    %v54 = vld [vmem:[#allocation2 + $0x50] sm:$0xff]
    %v55 = vld [vmem:[#allocation2 + $0x58] sm:$0xff]
    %v56 = vld [vmem:[#allocation2 + $0x60] sm:$0xff]
    %v57 = vld [vmem:[#allocation2 + $0x68] sm:$0xff]
    %v58 = vld [vmem:[#allocation2 + $0x70] sm:$0xff]
    %v59 = vld [vmem:[#allocation2 + $0x78] sm:$0xff]
    %v60 = vld [vmem:[#allocation5] sm:$0xff]
    %v61 = vld [vmem:[#allocation5 + $0x8] sm:$0xff]
    %v62 = vld [vmem:[#allocation5 + $0x10] sm:$0xff]
    %v63 = vld [vmem:[#allocation5 + $0x18] sm:$0xff]
    %v64 = vld [vmem:[#allocation5 + $0x20] sm:$0xff]
    %v65 = vld [vmem:[#allocation5 + $0x28] sm:$0xff]
    %v66 = vld [vmem:[#allocation5 + $0x30] sm:$0xff]
    %v67 = vld [vmem:[#allocation5 + $0x38] sm:$0xff]
    %v68 = vadd.f32 %v44, %v60
    %v69 = vadd.f32 %v45, %v61
    %v70 = vadd.f32 %v46, %v62
    %v71 = vadd.f32 %v47, %v63
    %v72 = vadd.f32 %v48, %v64
    %v73 = vadd.f32 %v49, %v65
    %v74 = vadd.f32 %v50, %v66
    %v75 = vadd.f32 %v51, %v67
    %v76 = vadd.f32 %v52, %v60
    %v77 = vadd.f32 %v53, %v61
    %v78 = vadd.f32 %v54, %v62
    %v79 = vadd.f32 %v55, %v63
    %v80 = vadd.f32 %v56, %v64
    %v81 = vadd.f32 %v57, %v65
    %v82 = vadd.f32 %v58, %v66
    %v83 = vadd.f32 %v59, %v67
    %84 = vst [vmem:[#allocation7] sm:$0xff] %v68
    %85 = vst [vmem:[#allocation7 + $0x8] sm:$0xff] %v69
    %86 = vst [vmem:[#allocation7 + $0x10] sm:$0xff] %v70
    %87 = vst [vmem:[#allocation7 + $0x18] sm:$0xff] %v71
    %88 = vst [vmem:[#allocation7 + $0x20] sm:$0xff] %v72
    %89 = vst [vmem:[#allocation7 + $0x28] sm:$0xff] %v73
    %90 = vst [vmem:[#allocation7 + $0x30] sm:$0xff] %v74
    %91 = vst [vmem:[#allocation7 + $0x38] sm:$0xff] %v75
    %92 = vst [vmem:[#allocation7 + $0x40] sm:$0xff] %v76
    %93 = vst [vmem:[#allocation7 + $0x48] sm:$0xff] %v77
    %94 = vst [vmem:[#allocation7 + $0x50] sm:$0xff] %v78
    %95 = vst [vmem:[#allocation7 + $0x58] sm:$0xff] %v79
    %96 = vst [vmem:[#allocation7 + $0x60] sm:$0xff] %v80
    %97 = vst [vmem:[#allocation7 + $0x68] sm:$0xff] %v81
    %98 = vst [vmem:[#allocation7 + $0x70] sm:$0xff] %v82
    %99 = vst [vmem:[#allocation7 + $0x78] sm:$0xff] %v83
    // Predicated region
    $region18: #{tpu_custom_call.1} parent=1 // pred_check
      _
    $region19: #{tpu_custom_call.1} parent=1 // pred_check_branch
      %101 = sbr.rel (0) target = $region21
    $region20: #{tpu_custom_call.1} parent=1 // pred_region
      %103 = vsyncadd [#allocation4], 0
      %s104 = sshll.u32 [#allocation7], 4
      %s105 = int_to_ptr.vmem [resolvable:$true] %s104
      %s106 = sshll.u32 %s2, 4
      %s107 = int_to_ptr.hbm [resolvable:$true] %s106
      %112 = dma.vmem_to_hbm [thread:$0]  %s105, 2048, %s107, [#allocation4], 512, 512, 32
    $region21: #{tpu_custom_call.1} parent=1 // pred_fallthru
      _
    // Predicated region
    $region22: #{tpu_custom_call.1} parent=1 // pred_check
      _
    $region23: #{tpu_custom_call.1} parent=1 // pred_check_branch
      %114 = sbr.rel (0) target = $region25
    $region24: #{tpu_custom_call.1} parent=1 // pred_region
      %116 = dma.done [#allocation4], 2048
    $region25: #{tpu_custom_call.1} parent=1 // pred_fallthru
      _
    %117 = vsyncpa [#allocation3], 1
    %118 = vsyncpa [#allocation6], 1
    %119 = vsyncpa [#allocation4], 1

</llo_original>
